<compile_context>
chip_gen: v5e
topology: v5e:2x2
jax: 0.10.0
libtpu: 0.0.40
codegen_flags: <defaults>
</compile_context>

<pallas_src>
import functools
import math

import jax
import jax.numpy as jnp
from jax.experimental import pallas as pl
from jax.experimental.pallas import tpu as pltpu


def _round_up(x, m):
    return ((x + m - 1) // m) * m


def _layernorm_kernel(x_ref, g_ref, b_ref, o_ref, *, eps):
    # x_ref: (tile_rows, F) block; g_ref/b_ref: (1, F) f32 broadcast params.
    x = x_ref[...].astype(jnp.float32)
    n = x.shape[-1]

    mean = jnp.mean(x, axis=-1, keepdims=True)
    diff = x - mean
    # unbiased variance (torch.std default: correction = 1)
    var = jnp.sum(diff * diff, axis=-1, keepdims=True) / (n - 1)
    std = jnp.sqrt(var)

    # Per-row reciprocal (exact) instead of a full-tile divide; the broadcast
    # multiply runs on the VPU, keeping the kernel HBM-bandwidth bound.
    inv = pl.reciprocal(std + eps, approx=False)

    y = diff * inv * g_ref[...] + b_ref[...]
    o_ref[...] = y.astype(o_ref.dtype)


def layer_norm(x, gamma, beta, *, eps=1e-6,
               max_block_bytes=8 << 20, vmem_limit_bytes=48 << 20):
    """Normalize over the last axis of x. gamma/beta: (features,).

    Any leading dims are flattened into rows; output has x's shape/dtype.
    """
    orig_shape = x.shape
    feats = orig_shape[-1]
    assert feats > 1, "features must be > 1 for the unbiased (N-1) std"
    assert gamma.shape == (feats,) and beta.shape == (feats,)

    rows = math.prod(orig_shape[:-1]) if len(orig_shape) > 1 else 1
    x2 = x.reshape(rows, feats)

    itemsize = jnp.dtype(x.dtype).itemsize
    # Sublane alignment: 8 rows for 4-byte dtypes, 16 for 2-byte (bf16 packing).
    sublane = 8 if itemsize >= 4 else (16 if itemsize == 2 else 32)

    # Largest sublane-aligned row tile that keeps one block under the budget.
    bytes_per_row = feats * itemsize
    rows_budget = max(sublane, (max_block_bytes // max(bytes_per_row, 1)))
    tile_rows = max(sublane, (rows_budget // sublane) * sublane)
    tile_rows = min(tile_rows, _round_up(rows, sublane))

    # Pad rows so the grid tiles evenly (padded rows are normalized too, but
    # sliced off afterwards; std+eps > 0 so no NaNs on all-zero pad rows).
    padded_rows = _round_up(rows, tile_rows)
    if padded_rows != rows:
        x2 = jnp.pad(x2, ((0, padded_rows - rows), (0, 0)))

    # Pre-cast broadcast params to f32 once (no per-grid-step casts).
    gamma2d = gamma.reshape(1, feats).astype(jnp.float32)
    beta2d = beta.reshape(1, feats).astype(jnp.float32)

    kernel = functools.partial(_layernorm_kernel, eps=eps)
    grid = (padded_rows // tile_rows,)

    cost = pl.CostEstimate(
        flops=8 * padded_rows * feats,
        transcendentals=2 * padded_rows,
        bytes_accessed=2 * padded_rows * feats * itemsize + 2 * feats * 4,
    )

    out = pl.pallas_call(
        kernel,
        out_shape=jax.ShapeDtypeStruct((padded_rows, feats), x.dtype),
        grid_spec=pltpu.PrefetchScalarGridSpec(
            num_scalar_prefetch=0,
            grid=grid,
            in_specs=[
                pl.BlockSpec((tile_rows, feats), lambda i: (i, 0)),
                pl.BlockSpec((1, feats), lambda i: (0, 0)),
                pl.BlockSpec((1, feats), lambda i: (0, 0)),
            ],
            out_specs=pl.BlockSpec((tile_rows, feats), lambda i: (i, 0)),
        ),
        compiler_params=pltpu.CompilerParams(
            dimension_semantics=("parallel",),
            vmem_limit_bytes=vmem_limit_bytes,
        ),
        cost_estimate=cost,
    )(x2, gamma2d, beta2d)

    if padded_rows != rows:
        out = out[:rows]
    return out.reshape(orig_shape)


def layer_norm_ref(x, gamma, beta, eps=1e-6):
    x32 = x.astype(jnp.float32)
    mean = jnp.mean(x32, axis=-1, keepdims=True)
    diff = x32 - mean
    var = jnp.sum(diff * diff, axis=-1, keepdims=True) / (x.shape[-1] - 1)
    std = jnp.sqrt(var)
    y = gamma.astype(jnp.float32) * diff / (std + eps) + beta.astype(jnp.float32)
    return y.astype(x.dtype)


if __name__ == "__main__":
    key = jax.random.PRNGKey(0)
    k_x, k_g, k_b = jax.random.split(key, 3)

    # Small demo shape: (batch=2, seq=32, features=128) — lane-dense last dim.
    batch, seq, features = 2, 32, 128
    x = jax.random.normal(k_x, (batch, seq, features), dtype=jnp.float32)

    # Module init is ones/zeros; perturb slightly to exercise gamma/beta paths.
    gamma = jnp.ones((features,), dtype=jnp.float32) \
        + 0.1 * jax.random.normal(k_g, (features,), dtype=jnp.float32)
    beta = 0.1 * jax.random.normal(k_b, (features,), dtype=jnp.float32)

    out = layer_norm(x, gamma, beta, eps=1e-6)
    out = jax.block_until_ready(out)

    ref = layer_norm_ref(x, gamma, beta, eps=1e-6)
    assert out.shape == x.shape and out.dtype == x.dtype
    assert jnp.allclose(out, ref, atol=1e-5, rtol=1e-5), "mismatch vs reference"

    print("KERNEL_OK")
</pallas_src>

<mosaic_0001>
module attributes {stable_mosaic.version = 11 : i64} {
  func.func @_layernorm_kernel(%arg0: i32, %arg1: memref<64x128xf32, #tpu.memory_space<vmem>>, %arg2: memref<1x128xf32, #tpu.memory_space<vmem>>, %arg3: memref<1x128xf32, #tpu.memory_space<vmem>>, %arg4: memref<64x128xf32, #tpu.memory_space<vmem>>) attributes {dimension_semantics = [#tpu.dimension_semantics<parallel>], iteration_bounds = array<i64: 1>, scalar_prefetch = 0 : i64, scratch_operands = 0 : i64, tpu.core_type = #tpu.core_type<tc>, window_params = [{transform_indices = @transform_0, window_bounds = array<i64: 64, 128>}, {pipeline_mode = #tpu.pipeline_mode<synchronous>, transform_indices = @transform_1, window_bounds = array<i64: 1, 128>}, {pipeline_mode = #tpu.pipeline_mode<synchronous>, transform_indices = @transform_2, window_bounds = array<i64: 1, 128>}, {transform_indices = @transform_3, window_bounds = array<i64: 64, 128>}]} {
    %c0 = arith.constant 0 : index
    %c0_0 = arith.constant 0 : index
    %0 = vector.load %arg1[%c0, %c0_0] : memref<64x128xf32, #tpu.memory_space<vmem>>, vector<64x128xf32>
    %cst = arith.constant dense<0.000000e+00> : vector<64xf32>
    %1 = vector.multi_reduction <add>, %0, %cst [1] : vector<64x128xf32> to vector<64xf32>
    %2 = vector.shape_cast %1 : vector<64xf32> to vector<64x1xf32>
    %cst_1 = arith.constant 1.280000e+02 : f32
    %3 = vector.broadcast %cst_1 : f32 to vector<64x1xf32>
    %4 = arith.divf %2, %3 : vector<64x1xf32>
    %5 = vector.broadcast %4 : vector<64x1xf32> to vector<64x128xf32>
    %6 = arith.subf %0, %5 : vector<64x128xf32>
    %7 = arith.mulf %6, %6 : vector<64x128xf32>
    %cst_2 = arith.constant dense<0.000000e+00> : vector<64xf32>
    %8 = vector.multi_reduction <add>, %7, %cst_2 [1] : vector<64x128xf32> to vector<64xf32>
    %9 = vector.shape_cast %8 : vector<64xf32> to vector<64x1xf32>
    %cst_3 = arith.constant 1.270000e+02 : f32
    %10 = vector.broadcast %cst_3 : f32 to vector<64x1xf32>
    %11 = arith.divf %9, %10 : vector<64x1xf32>
    %12 = math.sqrt %11 : vector<64x1xf32>
    %cst_4 = arith.constant 9.99999997E-7 : f32
    %13 = vector.broadcast %cst_4 : f32 to vector<64x1xf32>
    %14 = arith.addf %12, %13 : vector<64x1xf32>
    %15 = tpu.reciprocal %14 : vector<64x1xf32> -> vector<64x1xf32>
    %16 = vector.broadcast %15 : vector<64x1xf32> to vector<64x128xf32>
    %17 = arith.mulf %6, %16 : vector<64x128xf32>
    %c0_5 = arith.constant 0 : index
    %c0_6 = arith.constant 0 : index
    %18 = vector.load %arg2[%c0_5, %c0_6] : memref<1x128xf32, #tpu.memory_space<vmem>>, vector<1x128xf32>
    %19 = vector.broadcast %18 : vector<1x128xf32> to vector<64x128xf32>
    %20 = arith.mulf %17, %19 : vector<64x128xf32>
    %c0_7 = arith.constant 0 : index
    %c0_8 = arith.constant 0 : index
    %21 = vector.load %arg3[%c0_7, %c0_8] : memref<1x128xf32, #tpu.memory_space<vmem>>, vector<1x128xf32>
    %22 = vector.broadcast %21 : vector<1x128xf32> to vector<64x128xf32>
    %23 = arith.addf %20, %22 : vector<64x128xf32>
    %c0_9 = arith.constant 0 : index
    %c0_10 = arith.constant 0 : index
    %24 = vector.load %arg4[%c0_9, %c0_10] : memref<64x128xf32, #tpu.memory_space<vmem>>, vector<64x128xf32>
    tpu.vector_store %arg4[%c0_9, %c0_10], %23 {strides = array<i32>} : memref<64x128xf32, #tpu.memory_space<vmem>>, vector<64x128xf32>,
    return
  }
  func.func @transform_0(%arg0: i32) -> (i32, i32) {
    %c0_i32 = arith.constant 0 : i32
    %c0_i32_0 = arith.constant 0 : i32
    return %arg0, %c0_i32 : i32, i32
  }
  func.func @transform_1(%arg0: i32) -> (i32, i32) {
    %c0_i32 = arith.constant 0 : i32
    %c0_i32_0 = arith.constant 0 : i32
    %c0_i32_1 = arith.constant 0 : i32
    return %c0_i32, %c0_i32_0 : i32, i32
  }
  func.func @transform_2(%arg0: i32) -> (i32, i32) {
    %c0_i32 = arith.constant 0 : i32
    %c0_i32_0 = arith.constant 0 : i32
    %c0_i32_1 = arith.constant 0 : i32
    return %c0_i32, %c0_i32_0 : i32, i32
  }
  func.func @transform_3(%arg0: i32) -> (i32, i32) {
    %c0_i32 = arith.constant 0 : i32
    %c0_i32_0 = arith.constant 0 : i32
    return %arg0, %c0_i32 : i32, i32
  }
}

</mosaic_0001>

<llo_original>
// kernel: tpu_custom_call.1
$region0: #{tpu_custom_call.1}
  #allocation0 [shape = 'u32[]', space=smem, size = 0x4, offset = 0x4, fixed_abs, tag = 'smem constant byte address 0x4 - core index']
  #allocation1 [shape = 'u32[72,128]{1,0:T(1,128)}', space=vmem, size = 0x9000, scoped, tag = 'internal scratch']
  %s0 = inlined_call_operand.hbm [shape: f32[64,128], index: 0, kind: input, shape index: {}]
  %s1 = inlined_call_operand.hbm [shape: f32[1,128], index: 1, kind: input, shape index: {}]
  %s2 = inlined_call_operand.vmem [shape: f32[1,128], index: 2, kind: input, shape index: {}]
  %s3 = inlined_call_operand.hbm [shape: f32[64,128], index: 3, kind: output, shape index: {}]
  %s4 = sld [smem:[#allocation0]]
  $region30: #{tpu_custom_call.1} parent=0
    _
  %s6 = ssub.s32 1, %s4
  %s7 = scalar_select 0, %s6, %s4
  $region1: #{tpu_custom_call.1} parent=0
    #allocation2 [shape = 'u8[32768]{0}', space=vmem, size = 0x8000, scoped, tag = 'input window, operand 0, single buffered']
    #allocation3 [shape = 's32[1]{0}', space=sflag, size = 0x4, scoped, tag = 'scoped memory for tpu_custom_call.1']
    #allocation4 [shape = 's32[1]{0}', space=sflag, size = 0x4, scoped, tag = 'scoped memory for tpu_custom_call.1']
    #allocation5 [shape = 'u8[512]{0}', space=vmem, size = 0x400, scoped, tag = 'input window, operand 1, single buffered']
    #allocation6 [shape = 's32[1]{0}', space=sflag, size = 0x4, scoped, tag = 'scoped memory for tpu_custom_call.1']
    #allocation7 [shape = 'u8[32768]{0}', space=vmem, size = 0x8000, scoped, tag = 'output window, operand 0, single buffered']
    %8 = vsyncpa [#allocation3], 0
    %9 = vsyncpa [#allocation6], 0
    %10 = vsyncpa [#allocation4], 0
    // Predicated region
    $region2: #{tpu_custom_call.1} parent=1 // pred_check
      _
    $region3: #{tpu_custom_call.1} parent=1 // pred_check_branch
      %12 = sbr.rel (0) target = $region5
    $region4: #{tpu_custom_call.1} parent=1 // pred_region
      %14 = vsyncadd [#allocation3], 0
      %s15 = sshll.u32 %s0, 4
      %s16 = int_to_ptr.hbm [resolvable:$true] %s15
      %s17 = sshll.u32 [#allocation2], 4
      %s18 = int_to_ptr.vmem [resolvable:$true] %s17
      %23 = dma.hbm_to_vmem [thread:$0]  %s16, 1024, %s18, [#allocation3], 128, 128, 8
    $region5: #{tpu_custom_call.1} parent=1 // pred_fallthru
      _
    // Predicated region
    $region6: #{tpu_custom_call.1} parent=1 // pred_check
      _
    $region7: #{tpu_custom_call.1} parent=1 // pred_check_branch
      %25 = sbr.rel (0) target = $region9
    $region8: #{tpu_custom_call.1} parent=1 // pred_region
      %27 = vsyncadd [#allocation6], 0
      %s29 = sshll.u32 %s1, 4
      %s30 = int_to_ptr.hbm [resolvable:$true] %s29
      %s31 = sshll.u32 [#allocation5], 4
      %s32 = int_to_ptr.vmem [resolvable:$true] %s31
      %34 = dma.hbm_to_vmem [thread:$0]  %s30, 16, %s32, [#allocation6]
    $region9: #{tpu_custom_call.1} parent=1 // pred_fallthru
      _
    // Predicated region
    $region10: #{tpu_custom_call.1} parent=1 // pred_check
      _
    $region11: #{tpu_custom_call.1} parent=1 // pred_check_branch
      %36 = sbr.rel (0) target = $region13
    $region12: #{tpu_custom_call.1} parent=1 // pred_region
      _
    $region13: #{tpu_custom_call.1} parent=1 // pred_fallthru
      _
    // Predicated region
    $region14: #{tpu_custom_call.1} parent=1 // pred_check
      _
    $region15: #{tpu_custom_call.1} parent=1 // pred_check_branch
      %38 = sbr.rel (0) target = $region17
    $region16: #{tpu_custom_call.1} parent=1 // pred_region
      %40 = dma.done [#allocation3], 1024
    $region17: #{tpu_custom_call.1} parent=1 // pred_fallthru
      _
    // Predicated region
    $region18: #{tpu_custom_call.1} parent=1 // pred_check
      _
    $region19: #{tpu_custom_call.1} parent=1 // pred_check_branch
      %42 = sbr.rel (0) target = $region21
    $region20: #{tpu_custom_call.1} parent=1 // pred_region
      %44 = dma.done [#allocation6], 16
    $region21: #{tpu_custom_call.1} parent=1 // pred_fallthru
      _
    %v45 = vld [vmem:[#allocation2] sm:$0xff]
    %v46 = vld [vmem:[#allocation2 + $0x8] sm:$0xff]
    %v47 = vld [vmem:[#allocation2 + $0x10] sm:$0xff]
    %v48 = vld [vmem:[#allocation2 + $0x18] sm:$0xff]
    %v49 = vld [vmem:[#allocation2 + $0x20] sm:$0xff]
    %v50 = vld [vmem:[#allocation2 + $0x28] sm:$0xff]
    %v51 = vld [vmem:[#allocation2 + $0x30] sm:$0xff]
    %v52 = vld [vmem:[#allocation2 + $0x38] sm:$0xff]
    %53 = vadd.xlane.f32.xlu0 %v45
    %v54 = vpop.xlane.xlu0 %53
    %55 = vadd.xlane.f32.xlu0 %v46
    %v56 = vpop.xlane.xlu0 %55
    %57 = vadd.xlane.f32.xlu0 %v47
    %v58 = vpop.xlane.xlu0 %57
    %59 = vadd.xlane.f32.xlu0 %v48
    %v60 = vpop.xlane.xlu0 %59
    %61 = vadd.xlane.f32.xlu0 %v49
    %v62 = vpop.xlane.xlu0 %61
    %63 = vadd.xlane.f32.xlu0 %v50
    %v64 = vpop.xlane.xlu0 %63
    %65 = vadd.xlane.f32.xlu0 %v51
    %v66 = vpop.xlane.xlu0 %65
    %67 = vadd.xlane.f32.xlu0 %v52
    %v68 = vpop.xlane.xlu0 %67
    %v69 = vrcp.pop 128.0
    %v70 = vmul.f32 128.0, %v69
    %v71 = vsub.f32 1.0, %v70
    %v72 = vmul.f32 %v69, %v71
    %v73 = vadd.f32 %v69, %v72
    %vm74 = vweird.f32 %v69
    %v75 = vsel %vm74, %v69, %v73
    %v76 = vmul.f32 %v54, %v75
    %v77 = vmul.f32 %v56, %v75
    %v78 = vmul.f32 %v58, %v75
    %v79 = vmul.f32 %v60, %v75
    %v80 = vmul.f32 %v62, %v75
    %v81 = vmul.f32 %v64, %v75
    %v82 = vmul.f32 %v66, %v75
    %v83 = vmul.f32 %v68, %v75
    %v84 = vsub.f32 %v45, %v76
    %v85 = vsub.f32 %v46, %v77
    %v86 = vsub.f32 %v47, %v78
    %v87 = vsub.f32 %v48, %v79
    %v88 = vsub.f32 %v49, %v80
    %v89 = vsub.f32 %v50, %v81
    %v90 = vsub.f32 %v51, %v82
    %v91 = vsub.f32 %v52, %v83
    %v92 = vmul.f32 %v84, %v84
    %v93 = vmul.f32 %v85, %v85
    %v94 = vmul.f32 %v86, %v86
    %v95 = vmul.f32 %v87, %v87
    %v96 = vmul.f32 %v88, %v88
    %v97 = vmul.f32 %v89, %v89
    %v98 = vmul.f32 %v90, %v90
    %v99 = vmul.f32 %v91, %v91
    %100 = vadd.xlane.f32.xlu0 %v92
    %v101 = vpop.xlane.xlu0 %100
    %102 = vadd.xlane.f32.xlu0 %v93
    %v103 = vpop.xlane.xlu0 %102
    %104 = vadd.xlane.f32.xlu0 %v94
    %v105 = vpop.xlane.xlu0 %104
    %106 = vadd.xlane.f32.xlu0 %v95
    %v107 = vpop.xlane.xlu0 %106
    %108 = vadd.xlane.f32.xlu0 %v96
    %v109 = vpop.xlane.xlu0 %108
    %110 = vadd.xlane.f32.xlu0 %v97
    %v111 = vpop.xlane.xlu0 %110
    %112 = vadd.xlane.f32.xlu0 %v98
    %v113 = vpop.xlane.xlu0 %112
    %114 = vadd.xlane.f32.xlu0 %v99
    %v115 = vpop.xlane.xlu0 %114
    %v116 = vrcp.pop 127.0
    %v117 = vmul.f32 127.0, %v116
    %v118 = vsub.f32 1.0, %v117
    %v119 = vmul.f32 %v116, %v118
    %v120 = vadd.f32 %v116, %v119
    %vm121 = vweird.f32 %v116
    %v122 = vsel %vm121, %v116, %v120
    %v123 = vmul.f32 %v101, %v122
    %v124 = vmul.f32 %v103, %v122
    %v125 = vmul.f32 %v105, %v122
    %v126 = vmul.f32 %v107, %v122
    %v127 = vmul.f32 %v109, %v122
    %v128 = vmul.f32 %v111, %v122
    %v129 = vmul.f32 %v113, %v122
    %v130 = vmul.f32 %v115, %v122
    %v131 = vrsqrt.pop %v123
    %v132 = vmul.f32 %v131, %v123
    %v133 = vmul.f32 %v132, %v131
    %v134 = vmul.f32 0.5, %v133
    %v135 = vsub.f32 1.5, %v134
    %v136 = vmul.f32 %v131, %v135
    %v137 = vmul.f32 %v123, %v136
    %vm138 = vcmp.eq.f32.partialorder %v123, inf
    %v139 = vsel %vm138, %v123, %v137
    %vm140 = vcmp.eq.f32.partialorder %v123, 0.0
    %v141 = vand.u32 %v123, 2147483648
    %v142 = vsel %vm140, %v141, %v139
    %v143 = vrsqrt.pop %v124
    %v144 = vmul.f32 %v143, %v124
    %v145 = vmul.f32 %v144, %v143
    %v146 = vmul.f32 0.5, %v145
    %v147 = vsub.f32 1.5, %v146
    %v148 = vmul.f32 %v143, %v147
    %v149 = vmul.f32 %v124, %v148
    %vm150 = vcmp.eq.f32.partialorder %v124, inf
    %v151 = vsel %vm150, %v124, %v149
    %vm152 = vcmp.eq.f32.partialorder %v124, 0.0
    %v153 = vand.u32 %v124, 2147483648
    %v154 = vsel %vm152, %v153, %v151
    %v155 = vrsqrt.pop %v125
    %v156 = vmul.f32 %v155, %v125
    %v157 = vmul.f32 %v156, %v155
    %v158 = vmul.f32 0.5, %v157
    %v159 = vsub.f32 1.5, %v158
    %v160 = vmul.f32 %v155, %v159
    %v161 = vmul.f32 %v125, %v160
    %vm162 = vcmp.eq.f32.partialorder %v125, inf
    %v163 = vsel %vm162, %v125, %v161
    %vm164 = vcmp.eq.f32.partialorder %v125, 0.0
    %v165 = vand.u32 %v125, 2147483648
    %v166 = vsel %vm164, %v165, %v163
    %v167 = vrsqrt.pop %v126
    %v168 = vmul.f32 %v167, %v126
    %v169 = vmul.f32 %v168, %v167
    %v170 = vmul.f32 0.5, %v169
    %v171 = vsub.f32 1.5, %v170
    %v172 = vmul.f32 %v167, %v171
    %v173 = vmul.f32 %v126, %v172
    %vm174 = vcmp.eq.f32.partialorder %v126, inf
    %v175 = vsel %vm174, %v126, %v173
    %vm176 = vcmp.eq.f32.partialorder %v126, 0.0
    %v177 = vand.u32 %v126, 2147483648
    %v178 = vsel %vm176, %v177, %v175
    %v179 = vrsqrt.pop %v127
    %v180 = vmul.f32 %v179, %v127
    %v181 = vmul.f32 %v180, %v179
    %v182 = vmul.f32 0.5, %v181
    %v183 = vsub.f32 1.5, %v182
    %v184 = vmul.f32 %v179, %v183
    %v185 = vmul.f32 %v127, %v184
    %vm186 = vcmp.eq.f32.partialorder %v127, inf
    %v187 = vsel %vm186, %v127, %v185
    %vm188 = vcmp.eq.f32.partialorder %v127, 0.0
    %v189 = vand.u32 %v127, 2147483648
    %v190 = vsel %vm188, %v189, %v187
    %v191 = vrsqrt.pop %v128
    %v192 = vmul.f32 %v191, %v128
    %v193 = vmul.f32 %v192, %v191
    %v194 = vmul.f32 0.5, %v193
    %v195 = vsub.f32 1.5, %v194
    %v196 = vmul.f32 %v191, %v195
    %v197 = vmul.f32 %v128, %v196
    %vm198 = vcmp.eq.f32.partialorder %v128, inf
    %v199 = vsel %vm198, %v128, %v197
    %vm200 = vcmp.eq.f32.partialorder %v128, 0.0
    %v201 = vand.u32 %v128, 2147483648
    %v202 = vsel %vm200, %v201, %v199
    %v203 = vrsqrt.pop %v129
    %v204 = vmul.f32 %v203, %v129
    %v205 = vmul.f32 %v204, %v203
    %v206 = vmul.f32 0.5, %v205
    %v207 = vsub.f32 1.5, %v206
    %v208 = vmul.f32 %v203, %v207
    %v209 = vmul.f32 %v129, %v208
    %vm210 = vcmp.eq.f32.partialorder %v129, inf
    %v211 = vsel %vm210, %v129, %v209
    %vm212 = vcmp.eq.f32.partialorder %v129, 0.0
    %v213 = vand.u32 %v129, 2147483648
    %v214 = vsel %vm212, %v213, %v211
    %v215 = vrsqrt.pop %v130
    %v216 = vmul.f32 %v215, %v130
    %v217 = vmul.f32 %v216, %v215
    %v218 = vmul.f32 0.5, %v217
    %v219 = vsub.f32 1.5, %v218
    %v220 = vmul.f32 %v215, %v219
    %v221 = vmul.f32 %v130, %v220
    %vm222 = vcmp.eq.f32.partialorder %v130, inf
    %v223 = vsel %vm222, %v130, %v221
    %vm224 = vcmp.eq.f32.partialorder %v130, 0.0
    %v225 = vand.u32 %v130, 2147483648
    %v226 = vsel %vm224, %v225, %v223
    %v227 = vadd.f32 %v142, 1e-06
    %v228 = vadd.f32 %v154, 1e-06
    %v229 = vadd.f32 %v166, 1e-06
    %v230 = vadd.f32 %v178, 1e-06
    %v231 = vadd.f32 %v190, 1e-06
    %v232 = vadd.f32 %v202, 1e-06
    %v233 = vadd.f32 %v214, 1e-06
    %v234 = vadd.f32 %v226, 1e-06
    %v235 = vrcp.pop %v227
    %v236 = vmul.f32 %v227, %v235
    %v237 = vsub.f32 1.0, %v236
    %v238 = vmul.f32 %v235, %v237
    %v239 = vadd.f32 %v235, %v238
    %vm240 = vweird.f32 %v227
    %vm241 = vweird.f32 %v235
    %vm242 = vmor %vm240, %vm241
    %v243 = vsel %vm242, %v235, %v239
    %v244 = vand.u32 2147483647, %v227
    %vm245 = vcmp.eq.f32.partialorder %v244, 8.507059e+37
    %v246 = vand.u32 %v227, 2147483648
    %v247 = vor.u32 1.1754944e-38, %v246
    %v248 = vsel %vm245, %v247, %v243
    %v249 = vrcp.pop %v228
    %v250 = vmul.f32 %v228, %v249
    %v251 = vsub.f32 1.0, %v250
    %v252 = vmul.f32 %v249, %v251
    %v253 = vadd.f32 %v249, %v252
    %vm254 = vweird.f32 %v228
    %vm255 = vweird.f32 %v249
    %vm256 = vmor %vm254, %vm255
    %v257 = vsel %vm256, %v249, %v253
    %v258 = vand.u32 2147483647, %v228
    %vm259 = vcmp.eq.f32.partialorder %v258, 8.507059e+37
    %v260 = vand.u32 %v228, 2147483648
    %v261 = vor.u32 1.1754944e-38, %v260
    %v262 = vsel %vm259, %v261, %v257
    %v263 = vrcp.pop %v229
    %v264 = vmul.f32 %v229, %v263
    %v265 = vsub.f32 1.0, %v264
    %v266 = vmul.f32 %v263, %v265
    %v267 = vadd.f32 %v263, %v266
    %vm268 = vweird.f32 %v229
    %vm269 = vweird.f32 %v263
    %vm270 = vmor %vm268, %vm269
    %v271 = vsel %vm270, %v263, %v267
    %v272 = vand.u32 2147483647, %v229
    %vm273 = vcmp.eq.f32.partialorder %v272, 8.507059e+37
    %v274 = vand.u32 %v229, 2147483648
    %v275 = vor.u32 1.1754944e-38, %v274
    %v276 = vsel %vm273, %v275, %v271
    %v277 = vrcp.pop %v230
    %v278 = vmul.f32 %v230, %v277
    %v279 = vsub.f32 1.0, %v278
    %v280 = vmul.f32 %v277, %v279
    %v281 = vadd.f32 %v277, %v280
    %vm282 = vweird.f32 %v230
    %vm283 = vweird.f32 %v277
    %vm284 = vmor %vm282, %vm283
    %v285 = vsel %vm284, %v277, %v281
    %v286 = vand.u32 2147483647, %v230
    %vm287 = vcmp.eq.f32.partialorder %v286, 8.507059e+37
    %v288 = vand.u32 %v230, 2147483648
    %v289 = vor.u32 1.1754944e-38, %v288
    %v290 = vsel %vm287, %v289, %v285
    %v291 = vrcp.pop %v231
    %v292 = vmul.f32 %v231, %v291
    %v293 = vsub.f32 1.0, %v292
    %v294 = vmul.f32 %v291, %v293
    %v295 = vadd.f32 %v291, %v294
    %vm296 = vweird.f32 %v231
    %vm297 = vweird.f32 %v291
    %vm298 = vmor %vm296, %vm297
    %v299 = vsel %vm298, %v291, %v295
    %v300 = vand.u32 2147483647, %v231
    %vm301 = vcmp.eq.f32.partialorder %v300, 8.507059e+37
    %v302 = vand.u32 %v231, 2147483648
    %v303 = vor.u32 1.1754944e-38, %v302
    %v304 = vsel %vm301, %v303, %v299
    %v305 = vrcp.pop %v232
    %v306 = vmul.f32 %v232, %v305
    %v307 = vsub.f32 1.0, %v306
    %v308 = vmul.f32 %v305, %v307
    %v309 = vadd.f32 %v305, %v308
    %vm310 = vweird.f32 %v232
    %vm311 = vweird.f32 %v305
    %vm312 = vmor %vm310, %vm311
    %v313 = vsel %vm312, %v305, %v309
    %v314 = vand.u32 2147483647, %v232
    %vm315 = vcmp.eq.f32.partialorder %v314, 8.507059e+37
    %v316 = vand.u32 %v232, 2147483648
    %v317 = vor.u32 1.1754944e-38, %v316
    %v318 = vsel %vm315, %v317, %v313
    %v319 = vrcp.pop %v233
    %v320 = vmul.f32 %v233, %v319
    %v321 = vsub.f32 1.0, %v320
    %v322 = vmul.f32 %v319, %v321
    %v323 = vadd.f32 %v319, %v322
    %vm324 = vweird.f32 %v233
    %vm325 = vweird.f32 %v319
    %vm326 = vmor %vm324, %vm325
    %v327 = vsel %vm326, %v319, %v323
    %v328 = vand.u32 2147483647, %v233
    %vm329 = vcmp.eq.f32.partialorder %v328, 8.507059e+37
    %v330 = vand.u32 %v233, 2147483648
    %v331 = vor.u32 1.1754944e-38, %v330
    %v332 = vsel %vm329, %v331, %v327
    %v333 = vrcp.pop %v234
    %v334 = vmul.f32 %v234, %v333
    %v335 = vsub.f32 1.0, %v334
    %v336 = vmul.f32 %v333, %v335
    %v337 = vadd.f32 %v333, %v336
    %vm338 = vweird.f32 %v234
    %vm339 = vweird.f32 %v333
    %vm340 = vmor %vm338, %vm339
    %v341 = vsel %vm340, %v333, %v337
    %v342 = vand.u32 2147483647, %v234
    %vm343 = vcmp.eq.f32.partialorder %v342, 8.507059e+37
    %v344 = vand.u32 %v234, 2147483648
    %v345 = vor.u32 1.1754944e-38, %v344
    %v346 = vsel %vm343, %v345, %v341
    %v347 = vmul.f32 %v84, %v248
    %v348 = vmul.f32 %v85, %v262
    %v349 = vmul.f32 %v86, %v276
    %v350 = vmul.f32 %v87, %v290
    %v351 = vmul.f32 %v88, %v304
    %v352 = vmul.f32 %v89, %v318
    %v353 = vmul.f32 %v90, %v332
    %v354 = vmul.f32 %v91, %v346
    %v355 = vld [vmem:[#allocation5] sm:$0x1]
    %v357 = vperm.slane %v355, 0
    %v359 = vmul.f32 %v347, %v357
    %v360 = vmul.f32 %v348, %v357
    %v361 = vmul.f32 %v349, %v357
    %v362 = vmul.f32 %v350, %v357
    %v363 = vmul.f32 %v351, %v357
    %v364 = vmul.f32 %v352, %v357
    %v365 = vmul.f32 %v353, %v357
    %v366 = vmul.f32 %v354, %v357
    %v367 = vld [vmem:[%s2] sm:$0x1]
    %v369 = vperm.slane %v367, 0
    %v371 = vadd.f32 %v359, %v369
    %v372 = vadd.f32 %v360, %v369
    %v373 = vadd.f32 %v361, %v369
    %v374 = vadd.f32 %v362, %v369
    %v375 = vadd.f32 %v363, %v369
    %v376 = vadd.f32 %v364, %v369
    %v377 = vadd.f32 %v365, %v369
    %v378 = vadd.f32 %v366, %v369
    %379 = vst [vmem:[#allocation7] sm:$0xff] %v371
    %380 = vst [vmem:[#allocation7 + $0x8] sm:$0xff] %v372
    %381 = vst [vmem:[#allocation7 + $0x10] sm:$0xff] %v373
    %382 = vst [vmem:[#allocation7 + $0x18] sm:$0xff] %v374
    %383 = vst [vmem:[#allocation7 + $0x20] sm:$0xff] %v375
    %384 = vst [vmem:[#allocation7 + $0x28] sm:$0xff] %v376
    %385 = vst [vmem:[#allocation7 + $0x30] sm:$0xff] %v377
    %386 = vst [vmem:[#allocation7 + $0x38] sm:$0xff] %v378
    // Predicated region
    $region22: #{tpu_custom_call.1} parent=1 // pred_check
      _
    $region23: #{tpu_custom_call.1} parent=1 // pred_check_branch
      %388 = sbr.rel (0) target = $region25
    $region24: #{tpu_custom_call.1} parent=1 // pred_region
      %390 = vsyncadd [#allocation4], 0
      %s391 = sshll.u32 [#allocation7], 4
      %s392 = int_to_ptr.vmem [resolvable:$true] %s391
      %s393 = sshll.u32 %s3, 4
      %s394 = int_to_ptr.hbm [resolvable:$true] %s393
      %399 = dma.vmem_to_hbm [thread:$0]  %s392, 1024, %s394, [#allocation4], 128, 128, 8
    $region25: #{tpu_custom_call.1} parent=1 // pred_fallthru
      _
    // Predicated region
    $region26: #{tpu_custom_call.1} parent=1 // pred_check
      _
    $region27: #{tpu_custom_call.1} parent=1 // pred_check_branch
      %401 = sbr.rel (0) target = $region29
    $region28: #{tpu_custom_call.1} parent=1 // pred_region
      %403 = dma.done [#allocation4], 1024
    $region29: #{tpu_custom_call.1} parent=1 // pred_fallthru
      _
    %404 = vsyncpa [#allocation3], 1
    %405 = vsyncpa [#allocation6], 1
    %406 = vsyncpa [#allocation4], 1

</llo_original>
